<compile_context>
chip_gen: v6e
topology: v6e:2x2x1
jax: 0.10.0
libtpu: 0.0.40
codegen_flags: <defaults>
</compile_context>

<pallas_src>
import jax
import jax.numpy as jnp
from jax.experimental import pallas as pl
from jax.experimental.pallas import tpu as pltpu

IN_DIM = 28 * 28   # 784 (kept unpadded; equals the full array dim)
OUT_PAD = 128      # lane-dense output width (logical 10), sliced in wrapper


def mlp_kernel(x_ref, w1_ref, b1_ref, w2_ref, b2_ref, w3_ref, b3_ref,
               w4_ref, b4_ref, o_ref):
    # Cast streamed f32 activations to bf16 in-kernel (VPU is idle; HBM is the
    # bottleneck, so we never want to pay an extra wrapper pass for this).
    x = x_ref[...].astype(jnp.bfloat16)                              # (TB, 784)

    h1 = jnp.dot(x, w1_ref[...], preferred_element_type=jnp.float32) + b1_ref[...]
    h1 = jnp.maximum(h1, 0.0).astype(jnp.bfloat16)                   # (TB, 256)

    h2 = jnp.dot(h1, w2_ref[...], preferred_element_type=jnp.float32) + b2_ref[...]
    h2 = jnp.maximum(h2, 0.0).astype(jnp.bfloat16)                   # (TB, 128)

    h3 = jnp.dot(h2, w3_ref[...], preferred_element_type=jnp.float32) + b3_ref[...]
    h3 = jnp.maximum(h3, 0.0).astype(jnp.bfloat16)                   # (TB, 64)

    h4 = jnp.dot(h3, w4_ref[...], preferred_element_type=jnp.float32) + b4_ref[...]
    o_ref[...] = h4.astype(jnp.bfloat16)                             # (TB, 128) bf16 slab


def mlp_forward(x, params, *, batch_tile=1024):
    """x: (B, 1, 28, 28) or (B, 784) float32.  Returns (B, 10) float32.

    batch_tile: sweep 512/1024/2048.  Prefer <=1024 on v7x (64 MiB VMEM, and
    it keeps >=2 grid steps for megacore sharding at moderate batches).
    """
    B = x.shape[0]
    x2d = x.reshape(B, -1).astype(jnp.float32)        # == torch x.view(B, -1)
    assert x2d.shape[1] == IN_DIM

    # Adaptive batch tile: large tiles amortize per-step overhead; tiny batches
    # just round up to the 8-sublane granule.
    if B > batch_tile:
        TB = batch_tile
    else:
        TB = max(8, ((B + 7) // 8) * 8)
    Bp = ((B + TB - 1) // TB) * TB

    # Only pad rows when strictly necessary (avoids an extra HBM pass when
    # B is already a multiple of TB).
    if Bp != B:
        x_in = jnp.zeros((Bp, IN_DIM), jnp.float32).at[:B, :].set(x2d)
    else:
        x_in = x2d

    (w1, b1), (w2, b2), (w3, b3), (w4, b4) = params

    # bf16 weights (MXU operands); biases stay f32 (added post-accumulate).
    # fc4 is zero-padded to 128 output columns for a lane-dense, unmasked store.
    w1p = w1.astype(jnp.bfloat16)
    w2p = w2.astype(jnp.bfloat16)
    w3p = w3.astype(jnp.bfloat16)
    w4p = jnp.zeros((64, OUT_PAD), jnp.bfloat16).at[:, :10].set(w4.astype(jnp.bfloat16))
    b4p = jnp.zeros((1, OUT_PAD), jnp.float32).at[:, :10].set(b4)

    const = lambda shape: pl.BlockSpec(shape, lambda i: (0, 0))  # resident block

    out = pl.pallas_call(
        mlp_kernel,
        out_shape=jax.ShapeDtypeStruct((Bp, OUT_PAD), jnp.bfloat16),
        grid_spec=pltpu.PrefetchScalarGridSpec(
            num_scalar_prefetch=0,
            grid=(Bp // TB,),
            in_specs=[
                # Streamed raw f32 activations; 784 == full array dim -> legal
                # block; the slightly masked final MXU K-pass is free (HBM-bound).
                pl.BlockSpec((TB, IN_DIM), lambda i: (i, 0)),
                const((IN_DIM, 256)),  const((1, 256)),
                const((256, 128)),     const((1, 128)),
                const((128, 64)),      const((1, 64)),
                const((64, OUT_PAD)),  const((1, OUT_PAD)),
            ],
            out_specs=pl.BlockSpec((TB, OUT_PAD), lambda i: (i, 0)),
        ),
        compiler_params=pltpu.CompilerParams(
            dimension_semantics=("parallel",),     # megacore sharding on v7x
            vmem_limit_bytes=48 * 1024 * 1024,     # fits v7x 64 MiB physical w/ headroom
        ),
    )(x_in, w1p, b1, w2p, b2, w3p, b3, w4p, b4p)

    # Slice the logical logits and restore f32.  (If a profile ever shows the
    # input DMA exposed, add pipeline_mode=pl.Buffered(3) to the x BlockSpec.)
    return out[:B, :10].astype(jnp.float32)


def init_params(key):
    """nn.Linear-default init: U(-1/sqrt(fan_in), +1/sqrt(fan_in)).
    Weights stored as (in_features, out_features); biases as (1, out_features)."""
    dims = [(IN_DIM, 256), (256, 128), (128, 64), (64, 10)]
    params = []
    for (fan_in, fan_out) in dims:
        key, kw, kb = jax.random.split(key, 3)
        bound = 1.0 / jnp.sqrt(float(fan_in))
        w = jax.random.uniform(kw, (fan_in, fan_out), jnp.float32, -bound, bound)
        b = jax.random.uniform(kb, (1, fan_out), jnp.float32, -bound, bound)
        params.append((w, b))
    return params


if __name__ == "__main__":
    key = jax.random.PRNGKey(0)
    key, kx = jax.random.split(key)

    # Small batch of MNIST-shaped inputs (NCHW), as the module's forward implies.
    B = 2
    x = jax.random.normal(kx, (B, 1, 28, 28), jnp.float32)

    params = init_params(key)

    y = mlp_forward(x, params)
    y = jax.block_until_ready(y)
    assert y.shape == (B, 10)

    # Pure-JAX reference with the SAME bf16 operands + f32 accumulation, and
    # the same bf16 output quantization (kernel stores a bf16 slab).
    xr = x.reshape(B, -1).astype(jnp.bfloat16)
    (w1, b1), (w2, b2), (w3, b3), (w4, b4) = params
    dot = lambda a, w: jnp.dot(a, w.astype(jnp.bfloat16),
                               preferred_element_type=jnp.float32)
    r = jnp.maximum(dot(xr, w1) + b1, 0.0).astype(jnp.bfloat16)
    r = jnp.maximum(dot(r, w2) + b2, 0.0).astype(jnp.bfloat16)
    r = jnp.maximum(dot(r, w3) + b3, 0.0).astype(jnp.bfloat16)
    r = (dot(r, w4) + b4).astype(jnp.bfloat16).astype(jnp.float32)
    assert jnp.allclose(y, r, atol=2e-2, rtol=2e-2), (y, r)

    print("KERNEL_OK")
</pallas_src>

<mosaic_0001>
module attributes {stable_mosaic.version = 11 : i64} {
  func.func @mlp_kernel(%arg0: i32, %arg1: memref<8x784xf32, #tpu.memory_space<vmem>>, %arg2: memref<784x256xbf16, #tpu.memory_space<vmem>>, %arg3: memref<1x256xf32, #tpu.memory_space<vmem>>, %arg4: memref<256x128xbf16, #tpu.memory_space<vmem>>, %arg5: memref<1x128xf32, #tpu.memory_space<vmem>>, %arg6: memref<128x64xbf16, #tpu.memory_space<vmem>>, %arg7: memref<1x64xf32, #tpu.memory_space<vmem>>, %arg8: memref<64x128xbf16, #tpu.memory_space<vmem>>, %arg9: memref<1x128xf32, #tpu.memory_space<vmem>>, %arg10: memref<8x128xbf16, #tpu.memory_space<vmem>>) attributes {dimension_semantics = [#tpu.dimension_semantics<parallel>], iteration_bounds = array<i64: 1>, scalar_prefetch = 0 : i64, scratch_operands = 0 : i64, tpu.core_type = #tpu.core_type<tc>, window_params = [{transform_indices = @transform_0, window_bounds = array<i64: 8, 784>}, {pipeline_mode = #tpu.pipeline_mode<synchronous>, transform_indices = @transform_1, window_bounds = array<i64: 784, 256>}, {pipeline_mode = #tpu.pipeline_mode<synchronous>, transform_indices = @transform_2, window_bounds = array<i64: 1, 256>}, {pipeline_mode = #tpu.pipeline_mode<synchronous>, transform_indices = @transform_3, window_bounds = array<i64: 256, 128>}, {pipeline_mode = #tpu.pipeline_mode<synchronous>, transform_indices = @transform_4, window_bounds = array<i64: 1, 128>}, {pipeline_mode = #tpu.pipeline_mode<synchronous>, transform_indices = @transform_5, window_bounds = array<i64: 128, 64>}, {pipeline_mode = #tpu.pipeline_mode<synchronous>, transform_indices = @transform_6, window_bounds = array<i64: 1, 64>}, {pipeline_mode = #tpu.pipeline_mode<synchronous>, transform_indices = @transform_7, window_bounds = array<i64: 64, 128>}, {pipeline_mode = #tpu.pipeline_mode<synchronous>, transform_indices = @transform_8, window_bounds = array<i64: 1, 128>}, {transform_indices = @transform_9, window_bounds = array<i64: 8, 128>}]} {
    %c0 = arith.constant 0 : index
    %c0_0 = arith.constant 0 : index
    %0 = vector.load %arg1[%c0, %c0_0] : memref<8x784xf32, #tpu.memory_space<vmem>>, vector<8x784xf32>
    %1 = arith.truncf %0 : vector<8x784xf32> to vector<8x784xbf16>
    %c0_1 = arith.constant 0 : index
    %c0_2 = arith.constant 0 : index
    %2 = vector.load %arg2[%c0_1, %c0_2] : memref<784x256xbf16, #tpu.memory_space<vmem>>, vector<784x256xbf16>
    %cst = arith.constant dense<0.000000e+00> : vector<8x256xf32>
    %3 = tpu.matmul %1, %2, %cst {dimension_numbers = #tpu.dot_dimension_numbers<[1], [0], [0], [1], [0, 0, 1, 1], [], []>} : vector<8x784xbf16>, vector<784x256xbf16>, vector<8x256xf32> -> vector<8x256xf32>
    %c0_3 = arith.constant 0 : index
    %c0_4 = arith.constant 0 : index
    %4 = vector.load %arg3[%c0_3, %c0_4] : memref<1x256xf32, #tpu.memory_space<vmem>>, vector<1x256xf32>
    %5 = vector.broadcast %4 : vector<1x256xf32> to vector<8x256xf32>
    %6 = arith.addf %3, %5 : vector<8x256xf32>
    %cst_5 = arith.constant 0.000000e+00 : f32
    %7 = vector.broadcast %cst_5 : f32 to vector<8x256xf32>
    %8 = arith.maximumf %6, %7 : vector<8x256xf32>
    %9 = arith.truncf %8 : vector<8x256xf32> to vector<8x256xbf16>
    %c0_6 = arith.constant 0 : index
    %c0_7 = arith.constant 0 : index
    %10 = vector.load %arg4[%c0_6, %c0_7] : memref<256x128xbf16, #tpu.memory_space<vmem>>, vector<256x128xbf16>
    %cst_8 = arith.constant dense<0.000000e+00> : vector<8x128xf32>
    %11 = tpu.matmul %9, %10, %cst_8 {dimension_numbers = #tpu.dot_dimension_numbers<[1], [0], [0], [1], [0, 0, 1, 1], [], []>} : vector<8x256xbf16>, vector<256x128xbf16>, vector<8x128xf32> -> vector<8x128xf32>
    %c0_9 = arith.constant 0 : index
    %c0_10 = arith.constant 0 : index
    %12 = vector.load %arg5[%c0_9, %c0_10] : memref<1x128xf32, #tpu.memory_space<vmem>>, vector<1x128xf32>
    %13 = vector.broadcast %12 : vector<1x128xf32> to vector<8x128xf32>
    %14 = arith.addf %11, %13 : vector<8x128xf32>
    %cst_11 = arith.constant 0.000000e+00 : f32
    %15 = vector.broadcast %cst_11 : f32 to vector<8x128xf32>
    %16 = arith.maximumf %14, %15 : vector<8x128xf32>
    %17 = arith.truncf %16 : vector<8x128xf32> to vector<8x128xbf16>
    %c0_12 = arith.constant 0 : index
    %c0_13 = arith.constant 0 : index
    %18 = vector.load %arg6[%c0_12, %c0_13] : memref<128x64xbf16, #tpu.memory_space<vmem>>, vector<128x64xbf16>
    %cst_14 = arith.constant dense<0.000000e+00> : vector<8x64xf32>
    %19 = tpu.matmul %17, %18, %cst_14 {dimension_numbers = #tpu.dot_dimension_numbers<[1], [0], [0], [1], [0, 0, 1, 1], [], []>} : vector<8x128xbf16>, vector<128x64xbf16>, vector<8x64xf32> -> vector<8x64xf32>
    %c0_15 = arith.constant 0 : index
    %c0_16 = arith.constant 0 : index
    %20 = vector.load %arg7[%c0_15, %c0_16] : memref<1x64xf32, #tpu.memory_space<vmem>>, vector<1x64xf32>
    %21 = vector.broadcast %20 : vector<1x64xf32> to vector<8x64xf32>
    %22 = arith.addf %19, %21 : vector<8x64xf32>
    %cst_17 = arith.constant 0.000000e+00 : f32
    %23 = vector.broadcast %cst_17 : f32 to vector<8x64xf32>
    %24 = arith.maximumf %22, %23 : vector<8x64xf32>
    %25 = arith.truncf %24 : vector<8x64xf32> to vector<8x64xbf16>
    %c0_18 = arith.constant 0 : index
    %c0_19 = arith.constant 0 : index
    %26 = vector.load %arg8[%c0_18, %c0_19] : memref<64x128xbf16, #tpu.memory_space<vmem>>, vector<64x128xbf16>
    %cst_20 = arith.constant dense<0.000000e+00> : vector<8x128xf32>
    %27 = tpu.matmul %25, %26, %cst_20 {dimension_numbers = #tpu.dot_dimension_numbers<[1], [0], [0], [1], [0, 0, 1, 1], [], []>} : vector<8x64xbf16>, vector<64x128xbf16>, vector<8x128xf32> -> vector<8x128xf32>
    %c0_21 = arith.constant 0 : index
    %c0_22 = arith.constant 0 : index
    %28 = vector.load %arg9[%c0_21, %c0_22] : memref<1x128xf32, #tpu.memory_space<vmem>>, vector<1x128xf32>
    %29 = vector.broadcast %28 : vector<1x128xf32> to vector<8x128xf32>
    %30 = arith.addf %27, %29 : vector<8x128xf32>
    %31 = arith.truncf %30 : vector<8x128xf32> to vector<8x128xbf16>
    %c0_23 = arith.constant 0 : index
    %c0_24 = arith.constant 0 : index
    %32 = vector.load %arg10[%c0_23, %c0_24] : memref<8x128xbf16, #tpu.memory_space<vmem>>, vector<8x128xbf16>
    tpu.vector_store %arg10[%c0_23, %c0_24], %31 {strides = array<i32>} : memref<8x128xbf16, #tpu.memory_space<vmem>>, vector<8x128xbf16>,
    return
  }
  func.func @transform_0(%arg0: i32) -> (i32, i32) {
    %c0_i32 = arith.constant 0 : i32
    %c0_i32_0 = arith.constant 0 : i32
    return %arg0, %c0_i32 : i32, i32
  }
  func.func @transform_1(%arg0: i32) -> (i32, i32) {
    %c0_i32 = arith.constant 0 : i32
    %c0_i32_0 = arith.constant 0 : i32
    %c0_i32_1 = arith.constant 0 : i32
    return %c0_i32, %c0_i32_0 : i32, i32
  }
  func.func @transform_2(%arg0: i32) -> (i32, i32) {
    %c0_i32 = arith.constant 0 : i32
    %c0_i32_0 = arith.constant 0 : i32
    %c0_i32_1 = arith.constant 0 : i32
    return %c0_i32, %c0_i32_0 : i32, i32
  }
  func.func @transform_3(%arg0: i32) -> (i32, i32) {
    %c0_i32 = arith.constant 0 : i32
    %c0_i32_0 = arith.constant 0 : i32
    %c0_i32_1 = arith.constant 0 : i32
    return %c0_i32, %c0_i32_0 : i32, i32
  }
  func.func @transform_4(%arg0: i32) -> (i32, i32) {
    %c0_i32 = arith.constant 0 : i32
    %c0_i32_0 = arith.constant 0 : i32
    %c0_i32_1 = arith.constant 0 : i32
    return %c0_i32, %c0_i32_0 : i32, i32
  }
  func.func @transform_5(%arg0: i32) -> (i32, i32) {
    %c0_i32 = arith.constant 0 : i32
    %c0_i32_0 = arith.constant 0 : i32
    %c0_i32_1 = arith.constant 0 : i32
    return %c0_i32, %c0_i32_0 : i32, i32
  }
  func.func @transform_6(%arg0: i32) -> (i32, i32) {
    %c0_i32 = arith.constant 0 : i32
    %c0_i32_0 = arith.constant 0 : i32
    %c0_i32_1 = arith.constant 0 : i32
    return %c0_i32, %c0_i32_0 : i32, i32
  }
  func.func @transform_7(%arg0: i32) -> (i32, i32) {
    %c0_i32 = arith.constant 0 : i32
    %c0_i32_0 = arith.constant 0 : i32
    %c0_i32_1 = arith.constant 0 : i32
    return %c0_i32, %c0_i32_0 : i32, i32
  }
  func.func @transform_8(%arg0: i32) -> (i32, i32) {
    %c0_i32 = arith.constant 0 : i32
    %c0_i32_0 = arith.constant 0 : i32
    %c0_i32_1 = arith.constant 0 : i32
    return %c0_i32, %c0_i32_0 : i32, i32
  }
  func.func @transform_9(%arg0: i32) -> (i32, i32) {
    %c0_i32 = arith.constant 0 : i32
    %c0_i32_0 = arith.constant 0 : i32
    return %arg0, %c0_i32 : i32, i32
  }
}

</mosaic_0001>

<llo_original>
// kernel: tpu_custom_call.1
$region0: #{tpu_custom_call.1}
  #allocation0 [shape = 'u32[]', space=smem, size = 0x4, offset = 0x4, fixed_abs, tag = 'smem constant byte address 0x4 - core index']
  #allocation1 [shape = 'u32[144,128]{1,0:T(1,128)}', space=vmem, size = 0x12000, scoped, tag = 'internal scratch']
  %s0 = inlined_call_operand.vmem [shape: f32[8,784], index: 0, kind: input, shape index: {}]
  %s1 = inlined_call_operand.hbm [shape: bf16[784,256], index: 1, kind: input, shape index: {}]
  %s2 = inlined_call_operand.vmem [shape: f32[1,256], index: 2, kind: input, shape index: {}]
  %s3 = inlined_call_operand.hbm [shape: bf16[256,128], index: 3, kind: input, shape index: {}]
  %s4 = inlined_call_operand.vmem [shape: f32[1,128], index: 4, kind: input, shape index: {}]
  %s5 = inlined_call_operand.vmem [shape: bf16[128,64], index: 5, kind: input, shape index: {}]
  %s6 = inlined_call_operand.vmem [shape: f32[1,64], index: 6, kind: input, shape index: {}]
  %s7 = inlined_call_operand.vmem [shape: bf16[64,128], index: 7, kind: input, shape index: {}]
  %s8 = inlined_call_operand.vmem [shape: f32[1,128], index: 8, kind: input, shape index: {}]
  %s9 = inlined_call_operand.hbm [shape: bf16[8,128], index: 9, kind: output, shape index: {}]
  %s10 = sld [smem:[#allocation0]]
  $region54: #{tpu_custom_call.1} parent=0
    _
  %s12 = ssub.s32 1, %s10
  %s13 = scalar_select 0, %s12, %s10
  $region1: #{tpu_custom_call.1} parent=0
    #allocation2 [shape = 'u8[401408]{0}', space=vmem, size = 0x62000, scoped, tag = 'input window, operand 1, single buffered']
    #allocation3 [shape = 's32[1]{0}', space=sflag, size = 0x4, scoped, tag = 'scoped memory for tpu_custom_call.1']
    #allocation4 [shape = 's32[1]{0}', space=sflag, size = 0x4, scoped, tag = 'scoped memory for tpu_custom_call.1']
    #allocation5 [shape = 'u8[65536]{0}', space=vmem, size = 0x10000, scoped, tag = 'input window, operand 3, single buffered']
    #allocation6 [shape = 's32[1]{0}', space=sflag, size = 0x4, scoped, tag = 'scoped memory for tpu_custom_call.1']
    #allocation7 [shape = 'u8[2048]{0}', space=vmem, size = 0x800, scoped, tag = 'output window, operand 0, single buffered']
    %14 = vsyncpa [#allocation3], 0
    %15 = vsyncpa [#allocation6], 0
    %16 = vsyncpa [#allocation4], 0
    // Predicated region
    $region2: #{tpu_custom_call.1} parent=1 // pred_check
      _
    $region3: #{tpu_custom_call.1} parent=1 // pred_check_branch
      %18 = sbr.rel (0) target = $region5
    $region4: #{tpu_custom_call.1} parent=1 // pred_region
      _
    $region5: #{tpu_custom_call.1} parent=1 // pred_fallthru
      _
    // Predicated region
    $region6: #{tpu_custom_call.1} parent=1 // pred_check
      _
    $region7: #{tpu_custom_call.1} parent=1 // pred_check_branch
      %20 = sbr.rel (0) target = $region9
    $region8: #{tpu_custom_call.1} parent=1 // pred_region
      %s22 = ssub.s32 12544, 12544
      %23 = vsyncadd [#allocation3], %s22
      %s24 = sshll.u32 [#allocation2], 4
      %s25 = int_to_ptr.vmem [resolvable:$true] %s24
      %30 = dma.hbm_to_vmem [thread:$0]  %s1, 12544, %s25, [#allocation3], 128, 128, 8
    $region9: #{tpu_custom_call.1} parent=1 // pred_fallthru
      _
    // Predicated region
    $region10: #{tpu_custom_call.1} parent=1 // pred_check
      _
    $region11: #{tpu_custom_call.1} parent=1 // pred_check_branch
      %32 = sbr.rel (0) target = $region13
    $region12: #{tpu_custom_call.1} parent=1 // pred_region
      _
    $region13: #{tpu_custom_call.1} parent=1 // pred_fallthru
      _
    // Predicated region
    $region14: #{tpu_custom_call.1} parent=1 // pred_check
      _
    $region15: #{tpu_custom_call.1} parent=1 // pred_check_branch
      %34 = sbr.rel (0) target = $region17
    $region16: #{tpu_custom_call.1} parent=1 // pred_region
      %s36 = ssub.s32 2048, 2048
      %37 = vsyncadd [#allocation6], %s36
      %s38 = sshll.u32 [#allocation5], 4
      %s39 = int_to_ptr.vmem [resolvable:$true] %s38
      %44 = dma.hbm_to_vmem [thread:$0]  %s3, 2048, %s39, [#allocation6], 64, 64, 4
    $region17: #{tpu_custom_call.1} parent=1 // pred_fallthru
      _
    // Predicated region
    $region18: #{tpu_custom_call.1} parent=1 // pred_check
      _
    $region19: #{tpu_custom_call.1} parent=1 // pred_check_branch
      %46 = sbr.rel (0) target = $region21
    $region20: #{tpu_custom_call.1} parent=1 // pred_region
      _
    $region21: #{tpu_custom_call.1} parent=1 // pred_fallthru
      _
    // Predicated region
    $region22: #{tpu_custom_call.1} parent=1 // pred_check
      _
    $region23: #{tpu_custom_call.1} parent=1 // pred_check_branch
      %48 = sbr.rel (0) target = $region25
    $region24: #{tpu_custom_call.1} parent=1 // pred_region
      _
    $region25: #{tpu_custom_call.1} parent=1 // pred_fallthru
      _
    // Predicated region
    $region26: #{tpu_custom_call.1} parent=1 // pred_check
      _
    $region27: #{tpu_custom_call.1} parent=1 // pred_check_branch
      %50 = sbr.rel (0) target = $region29
    $region28: #{tpu_custom_call.1} parent=1 // pred_region
      _
    $region29: #{tpu_custom_call.1} parent=1 // pred_fallthru
      _
    // Predicated region
    $region30: #{tpu_custom_call.1} parent=1 // pred_check
      _
    $region31: #{tpu_custom_call.1} parent=1 // pred_check_branch
      %52 = sbr.rel (0) target = $region33
    $region32: #{tpu_custom_call.1} parent=1 // pred_region
      _
    $region33: #{tpu_custom_call.1} parent=1 // pred_fallthru
      _
    // Predicated region
    $region34: #{tpu_custom_call.1} parent=1 // pred_check
      _
    $region35: #{tpu_custom_call.1} parent=1 // pred_check_branch
      %54 = sbr.rel (0) target = $region37
    $region36: #{tpu_custom_call.1} parent=1 // pred_region
      _
    $region37: #{tpu_custom_call.1} parent=1 // pred_fallthru
      _
    // Predicated region
    $region38: #{tpu_custom_call.1} parent=1 // pred_check
      _
    $region39: #{tpu_custom_call.1} parent=1 // pred_check_branch
      %56 = sbr.rel (0) target = $region41
    $region40: #{tpu_custom_call.1} parent=1 // pred_region
      %57 = dma.done [#allocation3], 12544
    $region41: #{tpu_custom_call.1} parent=1 // pred_fallthru
      _
    // Predicated region
    $region42: #{tpu_custom_call.1} parent=1 // pred_check
      _
    $region43: #{tpu_custom_call.1} parent=1 // pred_check_branch
      %59 = sbr.rel (0) target = $region45
    $region44: #{tpu_custom_call.1} parent=1 // pred_region
      %60 = dma.done [#allocation6], 2048
    $region45: #{tpu_custom_call.1} parent=1 // pred_fallthru
      _
    %v62 = vld [vmem:[%s0] sm:$0xff]
    %v63 = vld [vmem:[%s0 + $0x8] sm:$0xff]
    %v64 = vld [vmem:[%s0 + $0x10] sm:$0xff]
    %v65 = vld [vmem:[%s0 + $0x18] sm:$0xff]
    %v66 = vld [vmem:[%s0 + $0x20] sm:$0xff]
    %v67 = vld [vmem:[%s0 + $0x28] sm:$0xff]
    %v68 = vld [vmem:[%s0 + $0x30] sm:$0xff]
    %v69 = vpack.c.bf16 %v62, %v62
    %v70 = vpack.c.bf16 %v63, %v63
    %v71 = vpack.c.bf16 %v64, %v64
    %v72 = vpack.c.bf16 %v65, %v65
    %v73 = vpack.c.bf16 %v66, %v66
    %v74 = vpack.c.bf16 %v67, %v67
    %v75 = vpack.c.bf16 %v68, %v68
    %v76 = vld [vmem:[#allocation2] sm:$0xff]
    %v77 = vld [vmem:[#allocation2 + $0x8] sm:$0xff]
    %v78 = vld [vmem:[#allocation2 + $0x10] sm:$0xff]
    %v79 = vld [vmem:[#allocation2 + $0x18] sm:$0xff]
    %v80 = vld [vmem:[#allocation2 + $0x20] sm:$0xff]
    %v81 = vld [vmem:[#allocation2 + $0x28] sm:$0xff]
    %v82 = vld [vmem:[#allocation2 + $0x30] sm:$0xff]
    %v83 = vld [vmem:[#allocation2 + $0x38] sm:$0xff]
    %v84 = vld [vmem:[#allocation2 + $0x40] sm:$0xff]
    %v85 = vld [vmem:[#allocation2 + $0x48] sm:$0xff]
    %v86 = vld [vmem:[#allocation2 + $0x50] sm:$0xff]
    %v87 = vld [vmem:[#allocation2 + $0x58] sm:$0xff]
    %v88 = vld [vmem:[#allocation2 + $0x60] sm:$0xff]
    %v89 = vld [vmem:[#allocation2 + $0x68] sm:$0xff]
    %v90 = vld [vmem:[#allocation2 + $0x70] sm:$0xff]
    %v91 = vld [vmem:[#allocation2 + $0x78] sm:$0xff]
    %v92 = vld [vmem:[#allocation2 + $0x80] sm:$0xff]
    %v93 = vld [vmem:[#allocation2 + $0x88] sm:$0xff]
    %v94 = vld [vmem:[#allocation2 + $0x90] sm:$0xff]
    %v95 = vld [vmem:[#allocation2 + $0x98] sm:$0xff]
    %v96 = vld [vmem:[#allocation2 + $0xa0] sm:$0xff]
    %v97 = vld [vmem:[#allocation2 + $0xa8] sm:$0xff]
    %v98 = vld [vmem:[#allocation2 + $0xb0] sm:$0xff]
    %v99 = vld [vmem:[#allocation2 + $0xb8] sm:$0xff]
    %v100 = vld [vmem:[#allocation2 + $0xc0] sm:$0xff]
    %v101 = vld [vmem:[#allocation2 + $0xc8] sm:$0xff]
    %v102 = vld [vmem:[#allocation2 + $0xd0] sm:$0xff]
    %v103 = vld [vmem:[#allocation2 + $0xd8] sm:$0xff]
    %v104 = vld [vmem:[#allocation2 + $0xe0] sm:$0xff]
    %v105 = vld [vmem:[#allocation2 + $0xe8] sm:$0xff]
    %v106 = vld [vmem:[#allocation2 + $0xf0] sm:$0xff]
    %v107 = vld [vmem:[#allocation2 + $0xf8] sm:$0xff]
    %v108 = vld [vmem:[#allocation2 + $0x100] sm:$0xff]
    %v109 = vld [vmem:[#allocation2 + $0x108] sm:$0xff]
    %v110 = vld [vmem:[#allocation2 + $0x110] sm:$0xff]
    %v111 = vld [vmem:[#allocation2 + $0x118] sm:$0xff]
    %v112 = vld [vmem:[#allocation2 + $0x120] sm:$0xff]
    %v113 = vld [vmem:[#allocation2 + $0x128] sm:$0xff]
    %v114 = vld [vmem:[#allocation2 + $0x130] sm:$0xff]
    %v115 = vld [vmem:[#allocation2 + $0x138] sm:$0xff]
    %v116 = vld [vmem:[#allocation2 + $0x140] sm:$0xff]
    %v117 = vld [vmem:[#allocation2 + $0x148] sm:$0xff]
    %v118 = vld [vmem:[#allocation2 + $0x150] sm:$0xff]
    %v119 = vld [vmem:[#allocation2 + $0x158] sm:$0xff]
    %v120 = vld [vmem:[#allocation2 + $0x160] sm:$0xff]
    %v121 = vld [vmem:[#allocation2 + $0x168] sm:$0xff]
    %v122 = vld [vmem:[#allocation2 + $0x170] sm:$0xff]
    %v123 = vld [vmem:[#allocation2 + $0x178] sm:$0xff]
    %v124 = vld [vmem:[#allocation2 + $0x180] sm:$0xff]
    %v125 = vld [vmem:[#allocation2 + $0x188] sm:$0xff]
    %v126 = vld [vmem:[#allocation2 + $0x190] sm:$0xff]
    %v127 = vld [vmem:[#allocation2 + $0x198] sm:$0xff]
    %v128 = vld [vmem:[#allocation2 + $0x1a0] sm:$0xff]
    %v129 = vld [vmem:[#allocation2 + $0x1a8] sm:$0xff]
    %v130 = vld [vmem:[#allocation2 + $0x1b0] sm:$0xff]
    %v131 = vld [vmem:[#allocation2 + $0x1b8] sm:$0xff]
    %v132 = vld [vmem:[#allocation2 + $0x1c0] sm:$0xff]
    %v133 = vld [vmem:[#allocation2 + $0x1c8] sm:$0xff]
    %v134 = vld [vmem:[#allocation2 + $0x1d0] sm:$0xff]
    %v135 = vld [vmem:[#allocation2 + $0x1d8] sm:$0xff]
    %v136 = vld [vmem:[#allocation2 + $0x1e0] sm:$0xff]
    %v137 = vld [vmem:[#allocation2 + $0x1e8] sm:$0xff]
    %v138 = vld [vmem:[#allocation2 + $0x1f0] sm:$0xff]
    %v139 = vld [vmem:[#allocation2 + $0x1f8] sm:$0xff]
    %v140 = vld [vmem:[#allocation2 + $0x200] sm:$0xff]
    %v141 = vld [vmem:[#allocation2 + $0x208] sm:$0xff]
    %v142 = vld [vmem:[#allocation2 + $0x210] sm:$0xff]
    %v143 = vld [vmem:[#allocation2 + $0x218] sm:$0xff]
    %v144 = vld [vmem:[#allocation2 + $0x220] sm:$0xff]
    %v145 = vld [vmem:[#allocation2 + $0x228] sm:$0xff]
    %v146 = vld [vmem:[#allocation2 + $0x230] sm:$0xff]
    %v147 = vld [vmem:[#allocation2 + $0x238] sm:$0xff]
    %v148 = vld [vmem:[#allocation2 + $0x240] sm:$0xff]
    %v149 = vld [vmem:[#allocation2 + $0x248] sm:$0xff]
    %v150 = vld [vmem:[#allocation2 + $0x250] sm:$0xff]
    %v151 = vld [vmem:[#allocation2 + $0x258] sm:$0xff]
    %v152 = vld [vmem:[#allocation2 + $0x260] sm:$0xff]
    %v153 = vld [vmem:[#allocation2 + $0x268] sm:$0xff]
    %v154 = vld [vmem:[#allocation2 + $0x270] sm:$0xff]
    %v155 = vld [vmem:[#allocation2 + $0x278] sm:$0xff]
    %v156 = vld [vmem:[#allocation2 + $0x280] sm:$0xff]
    %v157 = vld [vmem:[#allocation2 + $0x288] sm:$0xff]
    %v158 = vld [vmem:[#allocation2 + $0x290] sm:$0xff]
    %v159 = vld [vmem:[#allocation2 + $0x298] sm:$0xff]
    %v160 = vld [vmem:[#allocation2 + $0x2a0] sm:$0xff]
    %v161 = vld [vmem:[#allocation2 + $0x2a8] sm:$0xff]
    %v162 = vld [vmem:[#allocation2 + $0x2b0] sm:$0xff]
    %v163 = vld [vmem:[#allocation2 + $0x2b8] sm:$0xff]
    %v164 = vld [vmem:[#allocation2 + $0x2c0] sm:$0xff]
    %v165 = vld [vmem:[#allocation2 + $0x2c8] sm:$0xff]
    %v166 = vld [vmem:[#allocation2 + $0x2d0] sm:$0xff]
    %v167 = vld [vmem:[#allocation2 + $0x2d8] sm:$0xff]
    %v168 = vld [vmem:[#allocation2 + $0x2e0] sm:$0xff]
    %v169 = vld [vmem:[#allocation2 + $0x2e8] sm:$0xff]
    %v170 = vld [vmem:[#allocation2 + $0x2f0] sm:$0xff]
    %v171 = vld [vmem:[#allocation2 + $0x2f8] sm:$0xff]
    %v172 = vld [vmem:[#allocation2 + $0x300] sm:$0xff]
    %v173 = vld [vmem:[#allocation2 + $0x308] sm:$0xff]
    %v174 = vld [vmem:[%s2] sm:$0x3]
    %v176 = vlaneseq
    %v177 = vshrl.u32 %v176, 7
    %v178 = vsub.s32 0, %v177
    %v179 = vrot.slane %v174, %v178
    %v180 = vlaneseq
    %v181 = vshrl.u32 %v180, 7
    %v182 = vsub.s32 1, %v181
    %v183 = vrot.slane %v174, %v182
    %v284 = vunpack.c.l.b16 %v76
    %v285 = vunpack.c.h.b16 %v76
    %v286 = vunpack.c.l.b16 %v77
    %v287 = vunpack.c.h.b16 %v77
    %v288 = vunpack.c.l.b16 %v78
    %v289 = vunpack.c.h.b16 %v78
    %v290 = vunpack.c.l.b16 %v79
    %v291 = vunpack.c.h.b16 %v79
    %v292 = vunpack.c.l.b16 %v80
    %v293 = vunpack.c.h.b16 %v80
    %v294 = vunpack.c.l.b16 %v81
    %v295 = vunpack.c.h.b16 %v81
    %v296 = vunpack.c.l.b16 %v82
    %v297 = vunpack.c.h.b16 %v82
    %v298 = vunpack.c.l.b16 %v83
    %v299 = vunpack.c.h.b16 %v83
    %v300 = vunpack.c.l.b16 %v84
    %v301 = vunpack.c.h.b16 %v84
    %v302 = vunpack.c.l.b16 %v85
    %v303 = vunpack.c.h.b16 %v85
    %v304 = vunpack.c.l.b16 %v86
    %v305 = vunpack.c.h.b16 %v86
    %v306 = vunpack.c.l.b16 %v87
    %v307 = vunpack.c.h.b16 %v87
    %v308 = vunpack.c.l.b16 %v88
    %v309 = vunpack.c.h.b16 %v88
    %v310 = vunpack.c.l.b16 %v89
    %v311 = vunpack.c.h.b16 %v89
    %v312 = vunpack.c.l.b16 %v90
    %v313 = vunpack.c.h.b16 %v90
    %v314 = vunpack.c.l.b16 %v91
    %v315 = vunpack.c.h.b16 %v91
    %v316 = vunpack.c.l.b16 %v92
    %v317 = vunpack.c.h.b16 %v92
    %v318 = vunpack.c.l.b16 %v93
    %v319 = vunpack.c.h.b16 %v93
    %v320 = vunpack.c.l.b16 %v94
    %v321 = vunpack.c.h.b16 %v94
    %v322 = vunpack.c.l.b16 %v95
    %v323 = vunpack.c.h.b16 %v95
    %v324 = vunpack.c.l.b16 %v96
    %v325 = vunpack.c.h.b16 %v96
    %v326 = vunpack.c.l.b16 %v97
    %v327 = vunpack.c.h.b16 %v97
    %v328 = vunpack.c.l.b16 %v98
    %v329 = vunpack.c.h.b16 %v98
    %v330 = vunpack.c.l.b16 %v99
    %v331 = vunpack.c.h.b16 %v99
    %v332 = vunpack.c.l.b16 %v100
    %v333 = vunpack.c.h.b16 %v100
    %v334 = vunpack.c.l.b16 %v101
    %v335 = vunpack.c.h.b16 %v101
    %v336 = vunpack.c.l.b16 %v102
    %v337 = vunpack.c.h.b16 %v102
    %v338 = vunpack.c.l.b16 %v103
    %v339 = vunpack.c.h.b16 %v103
    %v340 = vunpack.c.l.b16 %v104
    %v341 = vunpack.c.h.b16 %v104
    %v342 = vunpack.c.l.b16 %v105
    %v343 = vunpack.c.h.b16 %v105
    %v344 = vunpack.c.l.b16 %v106
    %v345 = vunpack.c.h.b16 %v106
    %v346 = vunpack.c.l.b16 %v107
    %v347 = vunpack.c.h.b16 %v107
    %v348 = vunpack.c.l.b16 %v108
    %v349 = vunpack.c.h.b16 %v108
    %v350 = vunpack.c.l.b16 %v109
    %v351 = vunpack.c.h.b16 %v109
    %v352 = vunpack.c.l.b16 %v110
    %v353 = vunpack.c.h.b16 %v110
    %v354 = vunpack.c.l.b16 %v111
    %v355 = vunpack.c.h.b16 %v111
    %v356 = vunpack.c.l.b16 %v112
    %v357 = vunpack.c.h.b16 %v112
    %v358 = vunpack.c.l.b16 %v113
    %v359 = vunpack.c.h.b16 %v113
    %v360 = vunpack.c.l.b16 %v114
    %v361 = vunpack.c.h.b16 %v114
    %v362 = vunpack.c.l.b16 %v115
    %v363 = vunpack.c.h.b16 %v115
    %v364 = vunpack.c.l.b16 %v116
    %v365 = vunpack.c.h.b16 %v116
    %v366 = vunpack.c.l.b16 %v117
    %v367 = vunpack.c.h.b16 %v117
    %v368 = vunpack.c.l.b16 %v118
    %v369 = vunpack.c.h.b16 %v118
    %v370 = vunpack.c.l.b16 %v119
    %v371 = vunpack.c.h.b16 %v119
    %v372 = vunpack.c.l.b16 %v120
    %v373 = vunpack.c.h.b16 %v120
    %v374 = vunpack.c.l.b16 %v121
    %v375 = vunpack.c.h.b16 %v121
    %v376 = vunpack.c.l.b16 %v122
    %v377 = vunpack.c.h.b16 %v122
    %v378 = vunpack.c.l.b16 %v123
    %v379 = vunpack.c.h.b16 %v123
    %v380 = vunpack.c.l.b16 %v124
    %v381 = vunpack.c.h.b16 %v124
    %v382 = vunpack.c.l.b16 %v125
    %v383 = vunpack.c.h.b16 %v125
    %v384 = vunpack.c.l.b16 %v126
    %v385 = vunpack.c.h.b16 %v126
    %v386 = vunpack.c.l.b16 %v127
    %v387 = vunpack.c.h.b16 %v127
    %v388 = vunpack.c.l.b16 %v128
    %v389 = vunpack.c.h.b16 %v128
    %v390 = vunpack.c.l.b16 %v129
    %v391 = vunpack.c.h.b16 %v129
    %v392 = vunpack.c.l.b16 %v130
    %v393 = vunpack.c.h.b16 %v130
    %v394 = vunpack.c.l.b16 %v131
    %v395 = vunpack.c.h.b16 %v131
    %v396 = vunpack.c.l.b16 %v132
    %v397 = vunpack.c.h.b16 %v132
    %v398 = vunpack.c.l.b16 %v133
    %v399 = vunpack.c.h.b16 %v133
    %v400 = vunpack.c.l.b16 %v134
    %v401 = vunpack.c.h.b16 %v134
    %v402 = vunpack.c.l.b16 %v135
    %v403 = vunpack.c.h.b16 %v135
    %v404 = vunpack.c.l.b16 %v136
    %v405 = vunpack.c.h.b16 %v136
    %v406 = vunpack.c.l.b16 %v137
    %v407 = vunpack.c.h.b16 %v137
    %v408 = vunpack.c.l.b16 %v138
    %v409 = vunpack.c.h.b16 %v138
    %v410 = vunpack.c.l.b16 %v139
    %v411 = vunpack.c.h.b16 %v139
    %v412 = vunpack.c.l.b16 %v140
    %v413 = vunpack.c.h.b16 %v140
    %v414 = vunpack.c.l.b16 %v141
    %v415 = vunpack.c.h.b16 %v141
    %v416 = vunpack.c.l.b16 %v142
    %v417 = vunpack.c.h.b16 %v142
    %v418 = vunpack.c.l.b16 %v143
    %v419 = vunpack.c.h.b16 %v143
    %v420 = vunpack.c.l.b16 %v144
    %v421 = vunpack.c.h.b16 %v144
    %v422 = vunpack.c.l.b16 %v145
    %v423 = vunpack.c.h.b16 %v145
    %v424 = vunpack.c.l.b16 %v146
    %v425 = vunpack.c.h.b16 %v146
    %v426 = vunpack.c.l.b16 %v147
    %v427 = vunpack.c.h.b16 %v147
    %v428 = vunpack.c.l.b16 %v148
    %v429 = vunpack.c.h.b16 %v148
    %v430 = vunpack.c.l.b16 %v149
    %v431 = vunpack.c.h.b16 %v149
    %v432 = vunpack.c.l.b16 %v150
    %v433 = vunpack.c.h.b16 %v150
    %v434 = vunpack.c.l.b16 %v151
    %v435 = vunpack.c.h.b16 %v151
    %v436 = vunpack.c.l.b16 %v152
    %v437 = vunpack.c.h.b16 %v152
    %v438 = vunpack.c.l.b16 %v153
    %v439 = vunpack.c.h.b16 %v153
    %v440 = vunpack.c.l.b16 %v154
    %v441 = vunpack.c.h.b16 %v154
    %v442 = vunpack.c.l.b16 %v155
    %v443 = vunpack.c.h.b16 %v155
    %v444 = vunpack.c.l.b16 %v156
    %v445 = vunpack.c.h.b16 %v156
    %v446 = vunpack.c.l.b16 %v157
    %v447 = vunpack.c.h.b16 %v157
    %v448 = vunpack.c.l.b16 %v158
    %v449 = vunpack.c.h.b16 %v158
    %v450 = vunpack.c.l.b16 %v159
    %v451 = vunpack.c.h.b16 %v159
    %v452 = vunpack.c.l.b16 %v160
    %v453 = vunpack.c.h.b16 %v160
    %v454 = vunpack.c.l.b16 %v161
    %v455 = vunpack.c.h.b16 %v161
    %v456 = vunpack.c.l.b16 %v162
    %v457 = vunpack.c.h.b16 %v162
    %v458 = vunpack.c.l.b16 %v163
    %v459 = vunpack.c.h.b16 %v163
    %v460 = vunpack.c.l.b16 %v164
    %v461 = vunpack.c.h.b16 %v164
    %v462 = vunpack.c.l.b16 %v165
    %v463 = vunpack.c.h.b16 %v165
    %v464 = vunpack.c.l.b16 %v166
    %v465 = vunpack.c.h.b16 %v166
    %v466 = vunpack.c.l.b16 %v167
    %v467 = vunpack.c.h.b16 %v167
    %v468 = vunpack.c.l.b16 %v168
    %v469 = vunpack.c.h.b16 %v168
    %v470 = vunpack.c.l.b16 %v169
    %v471 = vunpack.c.h.b16 %v169
    %v472 = vunpack.c.l.b16 %v170
    %v473 = vunpack.c.h.b16 %v170
    %v474 = vunpack.c.l.b16 %v171
    %v475 = vunpack.c.h.b16 %v171
    %v476 = vunpack.c.l.b16 %v172
    %v477 = vunpack.c.h.b16 %v172
    %v478 = vunpack.c.l.b16 %v173
    %v479 = vunpack.c.h.b16 %v173
    %v480 = vpack.c.b16 %v286, %v284
    %v481 = vpack.c.b16 %v287, %v285
    %v482 = vpack.c.b16 %v290, %v288
    %v483 = vpack.c.b16 %v291, %v289
    %v484 = vpack.c.b16 %v294, %v292
    %v485 = vpack.c.b16 %v295, %v293
    %v486 = vpack.c.b16 %v298, %v296
    %v487 = vpack.c.b16 %v299, %v297
    %v488 = vpack.c.b16 %v302, %v300
    %v489 = vpack.c.b16 %v303, %v301
    %v490 = vpack.c.b16 %v306, %v304
    %v491 = vpack.c.b16 %v307, %v305
    %v492 = vpack.c.b16 %v310, %v308
    %v493 = vpack.c.b16 %v311, %v309
    %v494 = vpack.c.b16 %v314, %v312
    %v495 = vpack.c.b16 %v315, %v313
    %v496 = vpack.c.b16 %v318, %v316
    %v497 = vpack.c.b16 %v319, %v317
    %v498 = vpack.c.b16 %v322, %v320
    %v499 = vpack.c.b16 %v323, %v321
    %v500 = vpack.c.b16 %v326, %v324
    %v501 = vpack.c.b16 %v327, %v325
    %v502 = vpack.c.b16 %v330, %v328
    %v503 = vpack.c.b16 %v331, %v329
    %v504 = vpack.c.b16 %v334, %v332
    %v505 = vpack.c.b16 %v335, %v333
    %v506 = vpack.c.b16 %v338, %v336
    %v507 = vpack.c.b16 %v339, %v337
    %v508 = vpack.c.b16 %v342, %v340
    %v509 = vpack.c.b16 %v343, %v341
    %v510 = vpack.c.b16 %v346, %v344
    %v511 = vpack.c.b16 %v347, %v345
    %v512 = vpack.c.b16 %v350, %v348
    %v513 = vpack.c.b16 %v351, %v349
    %v514 = vpack.c.b16 %v354, %v352
    %v515 = vpack.c.b16 %v355, %v353
    %v516 = vpack.c.b16 %v358, %v356
    %v517 = vpack.c.b16 %v359, %v357
    %v518 = vpack.c.b16 %v362, %v360
    %v519 = vpack.c.b16 %v363, %v361
    %v520 = vpack.c.b16 %v366, %v364
    %v521 = vpack.c.b16 %v367, %v365
    %v522 = vpack.c.b16 %v370, %v368
    %v523 = vpack.c.b16 %v371, %v369
    %v524 = vpack.c.b16 %v374, %v372
    %v525 = vpack.c.b16 %v375, %v373
    %v526 = vpack.c.b16 %v378, %v376
    %v527 = vpack.c.b16 %v379, %v377
    %v528 = vpack.c.b16 %v382, %v380
    %v529 = vpack.c.b16 %v383, %v381
    %v530 = vpack.c.b16 %v386, %v384
    %v531 = vpack.c.b16 %v387, %v385
    %v532 = vpack.c.b16 %v390, %v388
    %v533 = vpack.c.b16 %v391, %v389
    %v534 = vpack.c.b16 %v394, %v392
    %v535 = vpack.c.b16 %v395, %v393
    %v536 = vpack.c.b16 %v398, %v396
    %v537 = vpack.c.b16 %v399, %v397
    %v538 = vpack.c.b16 %v402, %v400
    %v539 = vpack.c.b16 %v403, %v401
    %v540 = vpack.c.b16 %v406, %v404
    %v541 = vpack.c.b16 %v407, %v405
    %v542 = vpack.c.b16 %v410, %v408
    %v543 = vpack.c.b16 %v411, %v409
    %v544 = vpack.c.b16 %v414, %v412
    %v545 = vpack.c.b16 %v415, %v413
    %v546 = vpack.c.b16 %v418, %v416
    %v547 = vpack.c.b16 %v419, %v417
    %v548 = vpack.c.b16 %v422, %v420
    %v549 = vpack.c.b16 %v423, %v421
    %v550 = vpack.c.b16 %v426, %v424
    %v551 = vpack.c.b16 %v427, %v425
    %v552 = vpack.c.b16 %v430, %v428
    %v553 = vpack.c.b16 %v431, %v429
    %v554 = vpack.c.b16 %v434, %v432
    %v555 = vpack.c.b16 %v435, %v433
    %v556 = vpack.c.b16 %v438, %v436
    %v557 = vpack.c.b16 %v439, %v437
    %v558 = vpack.c.b16 %v442, %v440
    %v559 = vpack.c.b16 %v443, %v441
    %v560 = vpack.c.b16 %v446, %v444
    %v561 = vpack.c.b16 %v447, %v445
    %v562 = vpack.c.b16 %v450, %v448
    %v563 = vpack.c.b16 %v451, %v449
    %v564 = vpack.c.b16 %v454, %v452
    %v565 = vpack.c.b16 %v455, %v453
    %v566 = vpack.c.b16 %v458, %v456
    %v567 = vpack.c.b16 %v459, %v457
    %v568 = vpack.c.b16 %v462, %v460
    %v569 = vpack.c.b16 %v463, %v461
    %v570 = vpack.c.b16 %v466, %v464
    %v571 = vpack.c.b16 %v467, %v465
    %v572 = vpack.c.b16 %v470, %v468
    %v573 = vpack.c.b16 %v471, %v469
    %v574 = vpack.c.b16 %v474, %v472
    %v575 = vpack.c.b16 %v475, %v473
    %v576 = vpack.c.b16 %v478, %v476
    %v577 = vpack.c.b16 %v479, %v477
    %vm676 = vcmask 130048
    %v678 = vsel %vm676, %v75, 0
    %680 = vmatprep.subr.bf16.mxu0 %v495
    %681 = vmatpush1.bf16.msra.mxu0 %v494
    %682 = vmatprep.subr.bf16.mxu0 %v493
    %683 = vmatpush1.bf16.msra.mxu0 %v492
    %684 = vmatprep.subr.bf16.mxu0 %v491
    %685 = vmatpush1.bf16.msra.mxu0 %v490
    %686 = vmatprep.subr.bf16.mxu0 %v489
    %687 = vmatpush1.bf16.msra.mxu0 %v488
    %688 = vmatprep.subr.bf16.mxu0 %v487
    %689 = vmatpush1.bf16.msra.mxu0 %v486
    %690 = vmatprep.subr.bf16.mxu0 %v485
    %691 = vmatpush1.bf16.msra.mxu0 %v484
    %692 = vmatprep.subr.bf16.mxu0 %v483
    %693 = vmatpush1.bf16.msra.mxu0 %v482
    %694 = vmatprep.subr.bf16.mxu0 %v481
    %695 = vmatpush1.bf16.msra.mxu0 %v480
    %696 = vmatprep.subr.bf16.mxu0 %v511
    %697 = vmatpush2.bf16.msra.mxu0 %v510
    %698 = vmatprep.subr.bf16.mxu0 %v509
    %699 = vmatpush2.bf16.msra.mxu0 %v508
    %700 = vmatprep.subr.bf16.mxu0 %v507
    %701 = vmatpush2.bf16.msra.mxu0 %v506
    %702 = vmatprep.subr.bf16.mxu0 %v505
    %703 = vmatpush2.bf16.msra.mxu0 %v504
    %704 = vmatprep.subr.bf16.mxu0 %v503
    %705 = vmatpush2.bf16.msra.mxu0 %v502
    %706 = vmatprep.subr.bf16.mxu0 %v501
    %707 = vmatpush2.bf16.msra.mxu0 %v500
    %708 = vmatprep.subr.bf16.mxu0 %v499
    %709 = vmatpush2.bf16.msra.mxu0 %v498
    %710 = vmatprep.subr.bf16.mxu0 %v497
    %711 = vmatpush2.bf16.msra.mxu0 %v496
    %712 = vmatprep.mubr.bf16.mxu0 %v70
    %713 = vmatmul.mubr.bf16.gmra.mxu0 %v69
    %v714 = vpop.f32.mrf.mxu0
    %v715 = vadd.f32 %v179, %v714
    %v716 = vpop.f32.mrf.mxu0
    %v717 = vadd.f32 %v183, %v716
    %v718 = vpop.f32.mrf.mxu0
    %v719 = vpop.f32.mrf.mxu0
    %720 = vdwg.mxu0
    %721 = vmatprep.subr.bf16.mxu0 %v527
    %722 = vmatpush1.bf16.msra.mxu0 %v526
    %723 = vmatprep.subr.bf16.mxu0 %v525
    %724 = vmatpush1.bf16.msra.mxu0 %v524
    %725 = vmatprep.subr.bf16.mxu0 %v523
    %726 = vmatpush1.bf16.msra.mxu0 %v522
    %727 = vmatprep.subr.bf16.mxu0 %v521
    %728 = vmatpush1.bf16.msra.mxu0 %v520
    %729 = vmatprep.subr.bf16.mxu0 %v519
    %730 = vmatpush1.bf16.msra.mxu0 %v518
    %731 = vmatprep.subr.bf16.mxu0 %v517
    %732 = vmatpush1.bf16.msra.mxu0 %v516
    %733 = vmatprep.subr.bf16.mxu0 %v515
    %734 = vmatpush1.bf16.msra.mxu0 %v514
    %735 = vmatprep.subr.bf16.mxu0 %v513
    %736 = vmatpush1.bf16.msra.mxu0 %v512
    %737 = vmatprep.subr.bf16.mxu0 %v543
    %738 = vmatpush2.bf16.msra.mxu0 %v542
    %739 = vmatprep.subr.bf16.mxu0 %v541
    %740 = vmatpush2.bf16.msra.mxu0 %v540
    %741 = vmatprep.subr.bf16.mxu0 %v539
    %742 = vmatpush2.bf16.msra.mxu0 %v538
    %743 = vmatprep.subr.bf16.mxu0 %v537
    %744 = vmatpush2.bf16.msra.mxu0 %v536
    %745 = vmatprep.subr.bf16.mxu0 %v535
    %746 = vmatpush2.bf16.msra.mxu0 %v534
    %747 = vmatprep.subr.bf16.mxu0 %v533
    %748 = vmatpush2.bf16.msra.mxu0 %v532
    %749 = vmatprep.subr.bf16.mxu0 %v531
    %750 = vmatpush2.bf16.msra.mxu0 %v530
    %751 = vmatprep.subr.bf16.mxu0 %v529
    %752 = vmatpush2.bf16.msra.mxu0 %v528
    %753 = vmatprep.mubr.bf16.mxu0 %v72
    %754 = vmatmul.mubr.bf16.gmra.mxu0 %v71
    %v755 = vpop.f32.mrf.mxu0
    %v756 = vadd.f32 %v715, %v755
    %v757 = vpop.f32.mrf.mxu0
    %v758 = vadd.f32 %v717, %v757
    %v759 = vpop.f32.mrf.mxu0
    %v760 = vpop.f32.mrf.mxu0
    %761 = vdwg.mxu0
    %762 = vmatprep.subr.bf16.mxu0 %v559
    %763 = vmatpush1.bf16.msra.mxu0 %v558
    %764 = vmatprep.subr.bf16.mxu0 %v557
    %765 = vmatpush1.bf16.msra.mxu0 %v556
    %766 = vmatprep.subr.bf16.mxu0 %v555
    %767 = vmatpush1.bf16.msra.mxu0 %v554
    %768 = vmatprep.subr.bf16.mxu0 %v553
    %769 = vmatpush1.bf16.msra.mxu0 %v552
    %770 = vmatprep.subr.bf16.mxu0 %v551
    %771 = vmatpush1.bf16.msra.mxu0 %v550
    %772 = vmatprep.subr.bf16.mxu0 %v549
    %773 = vmatpush1.bf16.msra.mxu0 %v548
    %774 = vmatprep.subr.bf16.mxu0 %v547
    %775 = vmatpush1.bf16.msra.mxu0 %v546
    %776 = vmatprep.subr.bf16.mxu0 %v545
    %777 = vmatpush1.bf16.msra.mxu0 %v544
    %778 = vmatprep.subr.bf16.mxu0 %v575
    %779 = vmatpush2.bf16.msra.mxu0 %v574
    %780 = vmatprep.subr.bf16.mxu0 %v573
    %781 = vmatpush2.bf16.msra.mxu0 %v572
    %782 = vmatprep.subr.bf16.mxu0 %v571
    %783 = vmatpush2.bf16.msra.mxu0 %v570
    %784 = vmatprep.subr.bf16.mxu0 %v569
    %785 = vmatpush2.bf16.msra.mxu0 %v568
    %786 = vmatprep.subr.bf16.mxu0 %v567
    %787 = vmatpush2.bf16.msra.mxu0 %v566
    %788 = vmatprep.subr.bf16.mxu0 %v565
    %789 = vmatpush2.bf16.msra.mxu0 %v564
    %790 = vmatprep.subr.bf16.mxu0 %v563
    %791 = vmatpush2.bf16.msra.mxu0 %v562
    %792 = vmatprep.subr.bf16.mxu0 %v561
    %793 = vmatpush2.bf16.msra.mxu0 %v560
    %794 = vmatprep.mubr.bf16.mxu0 %v74
    %795 = vmatmul.mubr.bf16.gmra.mxu0 %v73
    %v796 = vpop.f32.mrf.mxu0
    %v797 = vadd.f32 %v756, %v796
    %v798 = vpop.f32.mrf.mxu0
    %v799 = vadd.f32 %v758, %v798
    %v800 = vpop.f32.mrf.mxu0
    %v801 = vpop.f32.mrf.mxu0
    %802 = vdwg.mxu0
    %803 = vmatprep.subr.bf16.mxu0 0
    %804 = vmatpush1.bf16.msra.mxu0 0
    %805 = vmatprep.subr.bf16.mxu0 0
    %806 = vmatpush1.bf16.msra.mxu0 0
    %807 = vmatprep.subr.bf16.mxu0 0
    %808 = vmatpush1.bf16.msra.mxu0 0
    %809 = vmatprep.subr.bf16.mxu0 0
    %810 = vmatpush1.bf16.msra.mxu0 0
    %811 = vmatprep.subr.bf16.mxu0 0
    %812 = vmatpush1.bf16.msra.mxu0 0
    %813 = vmatprep.subr.bf16.mxu0 0
    %814 = vmatpush1.bf16.msra.mxu0 0
    %815 = vmatprep.subr.bf16.mxu0 0
    %816 = vmatpush1.bf16.msra.mxu0 0
    %817 = vmatprep.subr.bf16.mxu0 %v577
    %818 = vmatpush1.bf16.msra.mxu0 %v576
    %819 = vmatprep.subr.bf16.mxu0 0
    %820 = vmatpush2.bf16.msra.mxu0 0
    %821 = vmatprep.subr.bf16.mxu0 0
    %822 = vmatpush2.bf16.msra.mxu0 0
    %823 = vmatprep.subr.bf16.mxu0 0
    %824 = vmatpush2.bf16.msra.mxu0 0
    %825 = vmatprep.subr.bf16.mxu0 0
    %826 = vmatpush2.bf16.msra.mxu0 0
    %827 = vmatprep.subr.bf16.mxu0 0
    %828 = vmatpush2.bf16.msra.mxu0 0
    %829 = vmatprep.subr.bf16.mxu0 0
    %830 = vmatpush2.bf16.msra.mxu0 0
    %831 = vmatprep.subr.bf16.mxu0 0
    %832 = vmatpush2.bf16.msra.mxu0 0
    %833 = vmatprep.subr.bf16.mxu0 0
    %834 = vmatpush2.bf16.msra.mxu0 0
    %835 = vmatprep.mubr.bf16.mxu0 0
    %836 = vmatmul.mubr.bf16.gmra.mxu0 %v678
    %v837 = vpop.f32.mrf.mxu0
    %v838 = vadd.f32 %v797, %v837
    %v839 = vpop.f32.mrf.mxu0
    %v840 = vadd.f32 %v799, %v839
    %v841 = vpop.f32.mrf.mxu0
    %v842 = vpop.f32.mrf.mxu0
    %843 = vdwg.mxu0
    %v844 = vmax.f32 %v838, 0.0
    %v845 = vmax.f32 %v840, 0.0
    %v846 = vpack.c.bf16 %v844, %v844
    %v847 = vpack.c.bf16 %v845, %v845
    %v848 = vld [vmem:[#allocation5] sm:$0xf]
    %v849 = vld [vmem:[#allocation5 + $0x4] sm:$0xf]
    %v850 = vld [vmem:[#allocation5 + $0x8] sm:$0xf]
    %v851 = vld [vmem:[#allocation5 + $0xc] sm:$0xf]
    %v852 = vld [vmem:[#allocation5 + $0x10] sm:$0xf]
    %v853 = vld [vmem:[#allocation5 + $0x14] sm:$0xf]
    %v854 = vld [vmem:[#allocation5 + $0x18] sm:$0xf]
    %v855 = vld [vmem:[#allocation5 + $0x1c] sm:$0xf]
    %v856 = vld [vmem:[#allocation5 + $0x20] sm:$0xf]
    %v857 = vld [vmem:[#allocation5 + $0x24] sm:$0xf]
    %v858 = vld [vmem:[#allocation5 + $0x28] sm:$0xf]
    %v859 = vld [vmem:[#allocation5 + $0x2c] sm:$0xf]
    %v860 = vld [vmem:[#allocation5 + $0x30] sm:$0xf]
    %v861 = vld [vmem:[#allocation5 + $0x34] sm:$0xf]
    %v862 = vld [vmem:[#allocation5 + $0x38] sm:$0xf]
    %v863 = vld [vmem:[#allocation5 + $0x3c] sm:$0xf]
    %v864 = vld [vmem:[#allocation5 + $0x40] sm:$0xf]
    %v865 = vld [vmem:[#allocation5 + $0x44] sm:$0xf]
    %v866 = vld [vmem:[#allocation5 + $0x48] sm:$0xf]
    %v867 = vld [vmem:[#allocation5 + $0x4c] sm:$0xf]
    %v868 = vld [vmem:[#allocation5 + $0x50] sm:$0xf]
    %v869 = vld [vmem:[#allocation5 + $0x54] sm:$0xf]
    %v870 = vld [vmem:[#allocation5 + $0x58] sm:$0xf]
    %v871 = vld [vmem:[#allocation5 + $0x5c] sm:$0xf]
    %v872 = vld [vmem:[#allocation5 + $0x60] sm:$0xf]
    %v873 = vld [vmem:[#allocation5 + $0x64] sm:$0xf]
    %v874 = vld [vmem:[#allocation5 + $0x68] sm:$0xf]
    %v875 = vld [vmem:[#allocation5 + $0x6c] sm:$0xf]
    %v876 = vld [vmem:[#allocation5 + $0x70] sm:$0xf]
    %v877 = vld [vmem:[#allocation5 + $0x74] sm:$0xf]
    %v878 = vld [vmem:[#allocation5 + $0x78] sm:$0xf]
    %v879 = vld [vmem:[#allocation5 + $0x7c] sm:$0xf]
    %v880 = vld [vmem:[%s4] sm:$0x1]
    %v882 = vlaneseq
    %v883 = vshrl.u32 %v882, 7
    %v884 = vsub.s32 0, %v883
    %v885 = vrot.slane %v880, %v884
    %v919 = vunpack.c.l.b16 %v848
    %v920 = vunpack.c.l.b16 %v849
    %v921 = vunpack.c.l.b16 %v850
    %v922 = vunpack.c.l.b16 %v851
    %v923 = vunpack.c.l.b16 %v852
    %v924 = vunpack.c.l.b16 %v853
    %v925 = vunpack.c.l.b16 %v854
    %v926 = vunpack.c.l.b16 %v855
    %v927 = vunpack.c.l.b16 %v856
    %v928 = vunpack.c.l.b16 %v857
    %v929 = vunpack.c.l.b16 %v858
    %v930 = vunpack.c.l.b16 %v859
    %v931 = vunpack.c.l.b16 %v860
    %v932 = vunpack.c.l.b16 %v861
    %v933 = vunpack.c.l.b16 %v862
    %v934 = vunpack.c.l.b16 %v863
    %v935 = vunpack.c.l.b16 %v864
    %v936 = vunpack.c.l.b16 %v865
    %v937 = vunpack.c.l.b16 %v866
    %v938 = vunpack.c.l.b16 %v867
    %v939 = vunpack.c.l.b16 %v868
    %v940 = vunpack.c.l.b16 %v869
    %v941 = vunpack.c.l.b16 %v870
    %v942 = vunpack.c.l.b16 %v871
    %v943 = vunpack.c.l.b16 %v872
    %v944 = vunpack.c.l.b16 %v873
    %v945 = vunpack.c.l.b16 %v874
    %v946 = vunpack.c.l.b16 %v875
    %v947 = vunpack.c.l.b16 %v876
    %v948 = vunpack.c.l.b16 %v877
    %v949 = vunpack.c.l.b16 %v878
    %v950 = vunpack.c.l.b16 %v879
    %v951 = vpack.c.b16 %v920, %v919
    %v952 = vpack.c.b16 %v922, %v921
    %v953 = vpack.c.b16 %v924, %v923
    %v954 = vpack.c.b16 %v926, %v925
    %v955 = vpack.c.b16 %v928, %v927
    %v956 = vpack.c.b16 %v930, %v929
    %v957 = vpack.c.b16 %v932, %v931
    %v958 = vpack.c.b16 %v934, %v933
    %v959 = vpack.c.b16 %v936, %v935
    %v960 = vpack.c.b16 %v938, %v937
    %v961 = vpack.c.b16 %v940, %v939
    %v962 = vpack.c.b16 %v942, %v941
    %v963 = vpack.c.b16 %v944, %v943
    %v964 = vpack.c.b16 %v946, %v945
    %v965 = vpack.c.b16 %v948, %v947
    %v966 = vpack.c.b16 %v950, %v949
    %983 = vmatprep.subr.bf16.mxu0 0
    %984 = vmatpush1.bf16.msra.mxu0 %v958
    %985 = vmatprep.subr.bf16.mxu0 0
    %986 = vmatpush1.bf16.msra.mxu0 %v957
    %987 = vmatprep.subr.bf16.mxu0 0
    %988 = vmatpush1.bf16.msra.mxu0 %v956
    %989 = vmatprep.subr.bf16.mxu0 0
    %990 = vmatpush1.bf16.msra.mxu0 %v955
    %991 = vmatprep.subr.bf16.mxu0 0
    %992 = vmatpush1.bf16.msra.mxu0 %v954
    %993 = vmatprep.subr.bf16.mxu0 0
    %994 = vmatpush1.bf16.msra.mxu0 %v953
    %995 = vmatprep.subr.bf16.mxu0 0
    %996 = vmatpush1.bf16.msra.mxu0 %v952
    %997 = vmatprep.subr.bf16.mxu0 0
    %998 = vmatpush1.bf16.msra.mxu0 %v951
    %999 = vmatprep.subr.bf16.mxu0 0
    %1000 = vmatpush2.bf16.msra.mxu0 %v966
    %1001 = vmatprep.subr.bf16.mxu0 0
    %1002 = vmatpush2.bf16.msra.mxu0 %v965
    %1003 = vmatprep.subr.bf16.mxu0 0
    %1004 = vmatpush2.bf16.msra.mxu0 %v964
    %1005 = vmatprep.subr.bf16.mxu0 0
    %1006 = vmatpush2.bf16.msra.mxu0 %v963
    %1007 = vmatprep.subr.bf16.mxu0 0
    %1008 = vmatpush2.bf16.msra.mxu0 %v962
    %1009 = vmatprep.subr.bf16.mxu0 0
    %1010 = vmatpush2.bf16.msra.mxu0 %v961
    %1011 = vmatprep.subr.bf16.mxu0 0
    %1012 = vmatpush2.bf16.msra.mxu0 %v960
    %1013 = vmatprep.subr.bf16.mxu0 0
    %1014 = vmatpush2.bf16.msra.mxu0 %v959
    %1015 = vmatprep.mubr.bf16.mxu0 %v847
    %1016 = vmatmul.mubr.bf16.gmra.mxu0 %v846
    %v1017 = vpop.f32.mrf.mxu0
    %v1018 = vadd.f32 %v885, %v1017
    %v1019 = vpop.f32.mrf.mxu0
    %v1020 = vpop.f32.mrf.mxu0
    %v1021 = vpop.f32.mrf.mxu0
    %1022 = vdwg.mxu0
    %v1023 = vmax.f32 %v1018, 0.0
    %v1024 = vpack.c.bf16 %v1023, %v1023
    %v1025 = vld [vmem:[%s5] sm:$0xf]
    %v1026 = vld [vmem:[%s5 + $0x4] sm:$0xf]
    %v1027 = vld [vmem:[%s5 + $0x8] sm:$0xf]
    %v1028 = vld [vmem:[%s5 + $0xc] sm:$0xf]
    %v1029 = vld [vmem:[%s5 + $0x10] sm:$0xf]
    %v1030 = vld [vmem:[%s5 + $0x14] sm:$0xf]
    %v1031 = vld [vmem:[%s5 + $0x18] sm:$0xf]
    %v1032 = vld [vmem:[%s5 + $0x1c] sm:$0xf]
    %v1033 = vld [vmem:[%s5 + $0x20] sm:$0xf]
    %v1034 = vld [vmem:[%s5 + $0x24] sm:$0xf]
    %v1035 = vld [vmem:[%s5 + $0x28] sm:$0xf]
    %v1036 = vld [vmem:[%s5 + $0x2c] sm:$0xf]
    %v1037 = vld [vmem:[%s5 + $0x30] sm:$0xf]
    %v1038 = vld [vmem:[%s5 + $0x34] sm:$0xf]
    %v1039 = vld [vmem:[%s5 + $0x38] sm:$0xf]
    %v1040 = vld [vmem:[%s5 + $0x3c] sm:$0xf]
    %v1041 = vld [vmem:[%s6] sm:$0x1]
    %v1043 = vlaneseq
    %v1044 = vshrl.u32 %v1043, 7
    %v1045 = vsub.s32 0, %v1044
    %v1046 = vrot.slane %v1041, %v1045
    %v1064 = vunpack.c.l.b16 %v1025
    %v1065 = vunpack.c.l.b16 %v1026
    %v1066 = vunpack.c.l.b16 %v1027
    %v1067 = vunpack.c.l.b16 %v1028
    %v1068 = vunpack.c.l.b16 %v1029
    %v1069 = vunpack.c.l.b16 %v1030
    %v1070 = vunpack.c.l.b16 %v1031
    %v1071 = vunpack.c.l.b16 %v1032
    %v1072 = vunpack.c.l.b16 %v1033
    %v1073 = vunpack.c.l.b16 %v1034
    %v1074 = vunpack.c.l.b16 %v1035
    %v1075 = vunpack.c.l.b16 %v1036
    %v1076 = vunpack.c.l.b16 %v1037
    %v1077 = vunpack.c.l.b16 %v1038
    %v1078 = vunpack.c.l.b16 %v1039
    %v1079 = vunpack.c.l.b16 %v1040
    %v1080 = vpack.c.b16 %v1065, %v1064
    %v1081 = vpack.c.b16 %v1067, %v1066
    %v1082 = vpack.c.b16 %v1069, %v1068
    %v1083 = vpack.c.b16 %v1071, %v1070
    %v1084 = vpack.c.b16 %v1073, %v1072
    %v1085 = vpack.c.b16 %v1075, %v1074
    %v1086 = vpack.c.b16 %v1077, %v1076
    %v1087 = vpack.c.b16 %v1079, %v1078
    %1096 = vmatprep.subr.bf16.mxu0 0
    %1097 = vmatpush1.bf16.msra.mxu0 %v1087
    %1098 = vmatprep.subr.bf16.mxu0 0
    %1099 = vmatpush1.bf16.msra.mxu0 %v1086
    %1100 = vmatprep.subr.bf16.mxu0 0
    %1101 = vmatpush1.bf16.msra.mxu0 %v1085
    %1102 = vmatprep.subr.bf16.mxu0 0
    %1103 = vmatpush1.bf16.msra.mxu0 %v1084
    %1104 = vmatprep.subr.bf16.mxu0 0
    %1105 = vmatpush1.bf16.msra.mxu0 %v1083
    %1106 = vmatprep.subr.bf16.mxu0 0
    %1107 = vmatpush1.bf16.msra.mxu0 %v1082
    %1108 = vmatprep.subr.bf16.mxu0 0
    %1109 = vmatpush1.bf16.msra.mxu0 %v1081
    %1110 = vmatprep.subr.bf16.mxu0 0
    %1111 = vmatpush1.bf16.msra.mxu0 %v1080
    %1112 = vmatprep.subr.bf16.mxu0 0
    %1113 = vmatpush2.bf16.msra.mxu0 0
    %1114 = vmatprep.subr.bf16.mxu0 0
    %1115 = vmatpush2.bf16.msra.mxu0 0
    %1116 = vmatprep.subr.bf16.mxu0 0
    %1117 = vmatpush2.bf16.msra.mxu0 0
    %1118 = vmatprep.subr.bf16.mxu0 0
    %1119 = vmatpush2.bf16.msra.mxu0 0
    %1120 = vmatprep.subr.bf16.mxu0 0
    %1121 = vmatpush2.bf16.msra.mxu0 0
    %1122 = vmatprep.subr.bf16.mxu0 0
    %1123 = vmatpush2.bf16.msra.mxu0 0
    %1124 = vmatprep.subr.bf16.mxu0 0
    %1125 = vmatpush2.bf16.msra.mxu0 0
    %1126 = vmatprep.subr.bf16.mxu0 0
    %1127 = vmatpush2.bf16.msra.mxu0 0
    %1128 = vmatprep.mubr.bf16.mxu0 0
    %1129 = vmatmul.mubr.bf16.gmra.mxu0 %v1024
    %v1130 = vpop.f32.mrf.mxu0
    %v1131 = vadd.f32 %v1046, %v1130
    %v1132 = vpop.f32.mrf.mxu0
    %v1133 = vpop.f32.mrf.mxu0
    %v1134 = vpop.f32.mrf.mxu0
    %1135 = vdwg.mxu0
    %v1136 = vmax.f32 %v1131, 0.0
    %v1137 = vpack.c.bf16 %v1136, %v1136
    %v1138 = vld [vmem:[%s7] sm:$0xf]
    %v1139 = vld [vmem:[%s7 + $0x4] sm:$0xf]
    %v1140 = vld [vmem:[%s7 + $0x8] sm:$0xf]
    %v1141 = vld [vmem:[%s7 + $0xc] sm:$0xf]
    %v1142 = vld [vmem:[%s7 + $0x10] sm:$0xf]
    %v1143 = vld [vmem:[%s7 + $0x14] sm:$0xf]
    %v1144 = vld [vmem:[%s7 + $0x18] sm:$0xf]
    %v1145 = vld [vmem:[%s7 + $0x1c] sm:$0xf]
    %v1146 = vld [vmem:[%s8] sm:$0x1]
    %v1148 = vlaneseq
    %v1149 = vshrl.u32 %v1148, 7
    %v1150 = vsub.s32 0, %v1149
    %v1151 = vrot.slane %v1146, %v1150
    %v1161 = vunpack.c.l.b16 %v1138
    %v1162 = vunpack.c.l.b16 %v1139
    %v1163 = vunpack.c.l.b16 %v1140
    %v1164 = vunpack.c.l.b16 %v1141
    %v1165 = vunpack.c.l.b16 %v1142
    %v1166 = vunpack.c.l.b16 %v1143
    %v1167 = vunpack.c.l.b16 %v1144
    %v1168 = vunpack.c.l.b16 %v1145
    %v1169 = vpack.c.b16 %v1162, %v1161
    %v1170 = vpack.c.b16 %v1164, %v1163
    %v1171 = vpack.c.b16 %v1166, %v1165
    %v1172 = vpack.c.b16 %v1168, %v1167
    %vm1177 = vcmask 523264
    %v1179 = vsel %vm1177, %v1137, 0
    %1181 = vmatprep.subr.bf16.mxu0 0
    %1182 = vmatpush1.bf16.msra.mxu0 0
    %1183 = vmatprep.subr.bf16.mxu0 0
    %1184 = vmatpush1.bf16.msra.mxu0 0
    %1185 = vmatprep.subr.bf16.mxu0 0
    %1186 = vmatpush1.bf16.msra.mxu0 0
    %1187 = vmatprep.subr.bf16.mxu0 0
    %1188 = vmatpush1.bf16.msra.mxu0 0
    %1189 = vmatprep.subr.bf16.mxu0 0
    %1190 = vmatpush1.bf16.msra.mxu0 %v1172
    %1191 = vmatprep.subr.bf16.mxu0 0
    %1192 = vmatpush1.bf16.msra.mxu0 %v1171
    %1193 = vmatprep.subr.bf16.mxu0 0
    %1194 = vmatpush1.bf16.msra.mxu0 %v1170
    %1195 = vmatprep.subr.bf16.mxu0 0
    %1196 = vmatpush1.bf16.msra.mxu0 %v1169
    %1197 = vmatprep.subr.bf16.mxu0 0
    %1198 = vmatpush2.bf16.msra.mxu0 0
    %1199 = vmatprep.subr.bf16.mxu0 0
    %1200 = vmatpush2.bf16.msra.mxu0 0
    %1201 = vmatprep.subr.bf16.mxu0 0
    %1202 = vmatpush2.bf16.msra.mxu0 0
    %1203 = vmatprep.subr.bf16.mxu0 0
    %1204 = vmatpush2.bf16.msra.mxu0 0
    %1205 = vmatprep.subr.bf16.mxu0 0
    %1206 = vmatpush2.bf16.msra.mxu0 0
    %1207 = vmatprep.subr.bf16.mxu0 0
    %1208 = vmatpush2.bf16.msra.mxu0 0
    %1209 = vmatprep.subr.bf16.mxu0 0
    %1210 = vmatpush2.bf16.msra.mxu0 0
    %1211 = vmatprep.subr.bf16.mxu0 0
    %1212 = vmatpush2.bf16.msra.mxu0 0
    %1213 = vmatprep.mubr.bf16.mxu0 0
    %1214 = vmatmul.mubr.bf16.gmra.mxu0 %v1179
    %v1215 = vpop.f32.mrf.mxu0
    %v1216 = vadd.f32 %v1151, %v1215
    %v1217 = vpop.f32.mrf.mxu0
    %v1218 = vpop.f32.mrf.mxu0
    %v1219 = vpop.f32.mrf.mxu0
    %1220 = vdwg.mxu0
    %v1221 = vpack.c.bf16 %v1216, %v1216
    %1222 = vst [vmem:[#allocation7] sm:$0xf] %v1221
    // Predicated region
    $region46: #{tpu_custom_call.1} parent=1 // pred_check
      _
    $region47: #{tpu_custom_call.1} parent=1 // pred_check_branch
      %1224 = sbr.rel (0) target = $region49
    $region48: #{tpu_custom_call.1} parent=1 // pred_region
      %s1226 = ssub.s32 64, 64
      %1227 = vsyncadd [#allocation4], %s1226
      %s1229 = sshll.u32 [#allocation7], 4
      %s1230 = int_to_ptr.vmem [resolvable:$true] %s1229
      %1232 = dma.vmem_to_hbm [thread:$0]  %s1230, 64, %s9, [#allocation4]
    $region49: #{tpu_custom_call.1} parent=1 // pred_fallthru
      _
    // Predicated region
    $region50: #{tpu_custom_call.1} parent=1 // pred_check
      _
    $region51: #{tpu_custom_call.1} parent=1 // pred_check_branch
      %1234 = sbr.rel (0) target = $region53
    $region52: #{tpu_custom_call.1} parent=1 // pred_region
      %1235 = dma.done [#allocation4], 64
    $region53: #{tpu_custom_call.1} parent=1 // pred_fallthru
      _
    %1236 = vsyncpa [#allocation3], 1
    %1237 = vsyncpa [#allocation6], 1
    %1238 = vsyncpa [#allocation4], 1

</llo_original>
